<compile_context>
chip_gen: v6e
topology: v6e:2x2x1
jax: 0.10.0
libtpu: 0.0.40
codegen_flags: <defaults>
</compile_context>

<pallas_src>
import jax
import jax.numpy as jnp
from jax.experimental import pallas as pl
from jax.experimental.pallas import tpu as pltpu

# ----------------------------- sizes ---------------------------------------
BATCH = 256       # batch
LATENT = 32       # decoder input / encoder output dim
DEC_HID = 64      # decoder hidden dim
N_CAT = 16        # number of categorical outputs
N_CONT = 16       # number of continuous outputs
N_OUT = N_CAT + N_CONT
ENC_HID = 64      # encoder hidden dim

P = 64            # padded weight square size (= max(DEC_HID, ENC_HID, N_OUT))
NUM_LAYERS = 3    # packed weight slots: dec1, fused(heads @ enc1), enc2


# ----------------------------- kernel --------------------------------------
def decoder_encoder_kernel(x_ref, w_ref, b_ref, out_ref):
    # x_ref:  [tile_b, LATENT]  f32
    # w_ref:  [3, P, P]         zero-padded weights (f32 or bf16)
    # b_ref:  [3, 1, P]         zero-padded biases (f32)
    cdt = w_ref.dtype
    x = x_ref[...].astype(cdt)

    w1 = w_ref[0][:LATENT, :]   # [LATENT, P]  decoder layer 1
    w2 = w_ref[1]               # [P, P]       fused (cat|cont heads) @ encoder layer 1
    w3 = w_ref[2]               # [P, P]       encoder layer 2 (cols >= LATENT are 0)

    # ---- Decoder layer 1 ----
    h = jnp.dot(x, w1, preferred_element_type=jnp.float32) + b_ref[0]
    h = jnp.maximum(h, 0.0)

    # ---- Decoder heads folded into Encoder layer 1 (linear->linear fold) ----
    h2 = jnp.dot(h.astype(cdt), w2, preferred_element_type=jnp.float32) + b_ref[1]
    h2 = jnp.maximum(h2, 0.0)

    # ---- Encoder layer 2 ----
    enc = jnp.dot(h2.astype(cdt), w3, preferred_element_type=jnp.float32) + b_ref[2]
    out_ref[...] = enc[:, :LATENT].astype(out_ref.dtype)


# ----------------------------- wrapper --------------------------------------
def decoder_encoder(x, w_packed, b_packed, *, tile_b, dim_semantics):
    batch = x.shape[0]
    n_tiles = pl.cdiv(batch, tile_b)
    padded_batch = n_tiles * tile_b
    if padded_batch != batch:
        x = jnp.pad(x, ((0, padded_batch - batch), (0, 0)))

    out = pl.pallas_call(
        decoder_encoder_kernel,
        out_shape=jax.ShapeDtypeStruct((padded_batch, LATENT), jnp.float32),
        grid=(n_tiles,),
        in_specs=[
            pl.BlockSpec((tile_b, LATENT), lambda i: (i, 0)),
            # Weights/biases: same block every grid step -> stay VMEM-resident.
            pl.BlockSpec((NUM_LAYERS, P, P), lambda i: (0, 0, 0)),
            pl.BlockSpec((NUM_LAYERS, 1, P), lambda i: (0, 0, 0)),
        ],
        out_specs=pl.BlockSpec((tile_b, LATENT), lambda i: (i, 0)),
        compiler_params=pltpu.CompilerParams(dimension_semantics=dim_semantics),
    )(x, w_packed, b_packed)
    return out[:batch]


def run_decoder_encoder(x, w_packed, b_packed):
    """Pick tile/grid per chip generation, with a safe single-tile fallback."""
    kind = jax.devices()[0].device_kind.lower()
    multi_tc = ("v7" in kind) or ("7x" in kind)   # v7x: 2 TensorCores per chip
    batch = x.shape[0]

    configs = []
    if multi_tc and batch % 2 == 0 and (batch // 2) % 8 == 0:
        half = batch // 2
        # Explicit cross-core sharding of the 2 grid steps on v7x.
        configs.append((half, (pltpu.CORE_PARALLEL,)))
        configs.append((half, ("parallel",)))
    # Single-TC chips (v5e/v6e): one grid step, no per-step overhead.
    configs.append((batch, ("arbitrary",)))

    err = None
    for tile_b, sem in configs:
        try:
            out = decoder_encoder(x, w_packed, b_packed,
                                  tile_b=tile_b, dim_semantics=sem)
            return jax.block_until_ready(out)
        except Exception as e:  # fall back to the next (safer) config
            err = e
    raise err


# ----------------------------- param packing --------------------------------
def pack_params(params, weight_dtype=jnp.float32):
    """Fold the linear heads into encoder L1 and pack into 2 padded buffers."""
    dw1, db1, dwc, dbc, dwn, dbn, ew1c, ew1n, eb1, ew2, eb2 = params

    # Fuse decoder heads: decoded = [cat | cont].
    w_heads = jnp.concatenate([dwc, dwn], axis=1)    # [DEC_HID, N_OUT]
    b_heads = jnp.concatenate([dbc, dbn], axis=1)    # [1, N_OUT]
    # Encoder first-layer weight over the concat.
    w_enc1 = jnp.concatenate([ew1c, ew1n], axis=0)   # [N_OUT, ENC_HID]

    # Linear->linear fold (no activation between heads and encoder L1).
    w23 = w_heads @ w_enc1                            # [DEC_HID, ENC_HID]
    b23 = b_heads @ w_enc1 + eb1                      # [1, ENC_HID]

    def pad_w(w):
        return jnp.pad(w, ((0, P - w.shape[0]), (0, P - w.shape[1])))

    def pad_b(b):
        return jnp.pad(b, ((0, 0), (0, P - b.shape[1])))

    w_packed = jnp.stack([pad_w(dw1), pad_w(w23), pad_w(ew2)]).astype(weight_dtype)
    b_packed = jnp.stack([pad_b(db1), pad_b(b23), pad_b(eb2)]).astype(jnp.float32)
    return w_packed, b_packed     # [3, P, P], [3, 1, P]


# ----------------------------- reference (plain JAX) ------------------------
def decoder_encoder_ref(x, params):
    dw1, db1, dwc, dbc, dwn, dbn, ew1c, ew1n, eb1, ew2, eb2 = params
    h = jnp.maximum(x @ dw1 + db1, 0.0)
    cat = h @ dwc + dbc
    cont = h @ dwn + dbn
    h2 = jnp.maximum(cat @ ew1c + cont @ ew1n + eb1, 0.0)
    return h2 @ ew2 + eb2


# ----------------------------- param init -----------------------------------
def init_params(key):
    keys = jax.random.split(key, 6)
    scale = 0.1

    def lin(k, fan_in, fan_out):
        return scale * jax.random.normal(k, (fan_in, fan_out), jnp.float32)

    dw1 = lin(keys[0], LATENT, DEC_HID)
    db1 = jnp.zeros((1, DEC_HID), jnp.float32)
    dwc = lin(keys[1], DEC_HID, N_CAT)
    dbc = jnp.zeros((1, N_CAT), jnp.float32)
    dwn = lin(keys[2], DEC_HID, N_CONT)
    dbn = jnp.zeros((1, N_CONT), jnp.float32)

    ew1c = lin(keys[3], N_CAT, ENC_HID)
    ew1n = lin(keys[4], N_CONT, ENC_HID)
    eb1 = jnp.zeros((1, ENC_HID), jnp.float32)
    ew2 = lin(keys[5], ENC_HID, LATENT)
    eb2 = jnp.zeros((1, LATENT), jnp.float32)

    return (dw1, db1, dwc, dbc, dwn, dbn, ew1c, ew1n, eb1, ew2, eb2)


# ----------------------------- main ------------------------------------------
if __name__ == "__main__":
    key = jax.random.PRNGKey(0)
    k_x, k_p = jax.random.split(key)

    x = jax.random.normal(k_x, (BATCH, LATENT), jnp.float32)
    params = init_params(k_p)

    # bf16 MXU operands on v6e/v7x; stay f32 on v5e (no bf16 VPU there).
    kind = jax.devices()[0].device_kind.lower()
    use_bf16 = ("v6" in kind) or ("v7" in kind) or ("7x" in kind)
    weight_dtype = jnp.bfloat16 if use_bf16 else jnp.float32

    w_packed, b_packed = pack_params(params, weight_dtype)
    out = run_decoder_encoder(x, w_packed, b_packed)

    ref = decoder_encoder_ref(x, params)
    assert out.shape == (BATCH, LATENT), out.shape
    if use_bf16:
        atol, rtol = 5e-3, 5e-2     # bf16 operand rounding
    else:
        atol, rtol = 1e-4, 1e-4     # f32 end-to-end (fold only re-associates)
    assert jnp.allclose(out, ref, atol=atol, rtol=rtol), "mismatch vs JAX reference"

    print("KERNEL_OK")
</pallas_src>

<mosaic_0001>
module attributes {stable_mosaic.version = 11 : i64} {
  func.func @decoder_encoder_kernel(%arg0: i32, %arg1: memref<256x32xf32, #tpu.memory_space<vmem>>, %arg2: memref<3x64x64xf32, #tpu.memory_space<vmem>>, %arg3: memref<3x1x64xf32, #tpu.memory_space<vmem>>, %arg4: memref<256x32xf32, #tpu.memory_space<vmem>>) attributes {dimension_semantics = [#tpu.dimension_semantics<arbitrary>], iteration_bounds = array<i64: 1>, scalar_prefetch = 0 : i64, scratch_operands = 0 : i64, tpu.core_type = #tpu.core_type<tc>, window_params = [{transform_indices = @transform_0, window_bounds = array<i64: 256, 32>}, {pipeline_mode = #tpu.pipeline_mode<synchronous>, transform_indices = @transform_1, window_bounds = array<i64: 3, 64, 64>}, {pipeline_mode = #tpu.pipeline_mode<synchronous>, transform_indices = @transform_2, window_bounds = array<i64: 3, 1, 64>}, {transform_indices = @transform_3, window_bounds = array<i64: 256, 32>}]} {
    %c0 = arith.constant 0 : index
    %c0_0 = arith.constant 0 : index
    %0 = vector.load %arg1[%c0, %c0_0] : memref<256x32xf32, #tpu.memory_space<vmem>>, vector<256x32xf32>
    %c0_1 = arith.constant 0 : index
    %c0_2 = arith.constant 0 : index
    %c0_3 = arith.constant 0 : index
    %1 = vector.load %arg2[%c0_1, %c0_2, %c0_3] : memref<3x64x64xf32, #tpu.memory_space<vmem>>, vector<1x64x64xf32>
    %2 = vector.shape_cast %1 : vector<1x64x64xf32> to vector<64x64xf32>
    %3 = vector.extract_strided_slice %2 {offsets = [0, 0], sizes = [32, 64], strides = [1, 1]} : vector<64x64xf32> to vector<32x64xf32>
    %c1 = arith.constant 1 : index
    %c0_4 = arith.constant 0 : index
    %c0_5 = arith.constant 0 : index
    %4 = vector.load %arg2[%c1, %c0_4, %c0_5] : memref<3x64x64xf32, #tpu.memory_space<vmem>>, vector<1x64x64xf32>
    %5 = vector.shape_cast %4 : vector<1x64x64xf32> to vector<64x64xf32>
    %c2 = arith.constant 2 : index
    %c0_6 = arith.constant 0 : index
    %c0_7 = arith.constant 0 : index
    %6 = vector.load %arg2[%c2, %c0_6, %c0_7] : memref<3x64x64xf32, #tpu.memory_space<vmem>>, vector<1x64x64xf32>
    %7 = vector.shape_cast %6 : vector<1x64x64xf32> to vector<64x64xf32>
    %cst = arith.constant dense<0.000000e+00> : vector<256x64xf32>
    %8 = tpu.matmul %0, %3, %cst {dimension_numbers = #tpu.dot_dimension_numbers<[1], [0], [0], [1], [0, 0, 1, 1], [], []>} : vector<256x32xf32>, vector<32x64xf32>, vector<256x64xf32> -> vector<256x64xf32>
    %c0_8 = arith.constant 0 : index
    %c0_9 = arith.constant 0 : index
    %c0_10 = arith.constant 0 : index
    %9 = vector.load %arg3[%c0_8, %c0_9, %c0_10] : memref<3x1x64xf32, #tpu.memory_space<vmem>>, vector<1x1x64xf32>
    %10 = vector.shape_cast %9 : vector<1x1x64xf32> to vector<1x64xf32>
    %11 = vector.broadcast %10 : vector<1x64xf32> to vector<256x64xf32>
    %12 = arith.addf %8, %11 : vector<256x64xf32>
    %cst_11 = arith.constant 0.000000e+00 : f32
    %13 = vector.broadcast %cst_11 : f32 to vector<256x64xf32>
    %14 = arith.maximumf %12, %13 : vector<256x64xf32>
    %cst_12 = arith.constant dense<0.000000e+00> : vector<256x64xf32>
    %15 = tpu.matmul %14, %5, %cst_12 {dimension_numbers = #tpu.dot_dimension_numbers<[1], [0], [0], [1], [0, 0, 1, 1], [], []>} : vector<256x64xf32>, vector<64x64xf32>, vector<256x64xf32> -> vector<256x64xf32>
    %c1_13 = arith.constant 1 : index
    %c0_14 = arith.constant 0 : index
    %c0_15 = arith.constant 0 : index
    %16 = vector.load %arg3[%c1_13, %c0_14, %c0_15] : memref<3x1x64xf32, #tpu.memory_space<vmem>>, vector<1x1x64xf32>
    %17 = vector.shape_cast %16 : vector<1x1x64xf32> to vector<1x64xf32>
    %18 = vector.broadcast %17 : vector<1x64xf32> to vector<256x64xf32>
    %19 = arith.addf %15, %18 : vector<256x64xf32>
    %cst_16 = arith.constant 0.000000e+00 : f32
    %20 = vector.broadcast %cst_16 : f32 to vector<256x64xf32>
    %21 = arith.maximumf %19, %20 : vector<256x64xf32>
    %cst_17 = arith.constant dense<0.000000e+00> : vector<256x64xf32>
    %22 = tpu.matmul %21, %7, %cst_17 {dimension_numbers = #tpu.dot_dimension_numbers<[1], [0], [0], [1], [0, 0, 1, 1], [], []>} : vector<256x64xf32>, vector<64x64xf32>, vector<256x64xf32> -> vector<256x64xf32>
    %c2_18 = arith.constant 2 : index
    %c0_19 = arith.constant 0 : index
    %c0_20 = arith.constant 0 : index
    %23 = vector.load %arg3[%c2_18, %c0_19, %c0_20] : memref<3x1x64xf32, #tpu.memory_space<vmem>>, vector<1x1x64xf32>
    %24 = vector.shape_cast %23 : vector<1x1x64xf32> to vector<1x64xf32>
    %25 = vector.broadcast %24 : vector<1x64xf32> to vector<256x64xf32>
    %26 = arith.addf %22, %25 : vector<256x64xf32>
    %27 = vector.extract_strided_slice %26 {offsets = [0, 0], sizes = [256, 32], strides = [1, 1]} : vector<256x64xf32> to vector<256x32xf32>
    %c0_21 = arith.constant 0 : index
    %c0_22 = arith.constant 0 : index
    %28 = vector.load %arg4[%c0_21, %c0_22] : memref<256x32xf32, #tpu.memory_space<vmem>>, vector<256x32xf32>
    tpu.vector_store %arg4[%c0_21, %c0_22], %27 {strides = array<i32>} : memref<256x32xf32, #tpu.memory_space<vmem>>, vector<256x32xf32>,
    return
  }
  func.func @transform_0(%arg0: i32) -> (i32, i32) {
    %c0_i32 = arith.constant 0 : i32
    %c0_i32_0 = arith.constant 0 : i32
    return %arg0, %c0_i32 : i32, i32
  }
  func.func @transform_1(%arg0: i32) -> (i32, i32, i32) {
    %c0_i32 = arith.constant 0 : i32
    %c0_i32_0 = arith.constant 0 : i32
    %c0_i32_1 = arith.constant 0 : i32
    %c0_i32_2 = arith.constant 0 : i32
    return %c0_i32, %c0_i32_0, %c0_i32_1 : i32, i32, i32
  }
  func.func @transform_2(%arg0: i32) -> (i32, i32, i32) {
    %c0_i32 = arith.constant 0 : i32
    %c0_i32_0 = arith.constant 0 : i32
    %c0_i32_1 = arith.constant 0 : i32
    %c0_i32_2 = arith.constant 0 : i32
    return %c0_i32, %c0_i32_0, %c0_i32_1 : i32, i32, i32
  }
  func.func @transform_3(%arg0: i32) -> (i32, i32) {
    %c0_i32 = arith.constant 0 : i32
    %c0_i32_0 = arith.constant 0 : i32
    return %arg0, %c0_i32 : i32, i32
  }
}

</mosaic_0001>

<llo_original>
// kernel: tpu_custom_call.1
$region0: #{tpu_custom_call.1}
  #allocation0 [shape = 'u32[]', space=smem, size = 0x4, offset = 0x4, fixed_abs, tag = 'smem constant byte address 0x4 - core index']
  #allocation1 [shape = 'u32[144,128]{1,0:T(1,128)}', space=vmem, size = 0x12000, scoped, tag = 'internal scratch']
  %s0 = inlined_call_operand.vmem [shape: f32[256,32], index: 0, kind: input, shape index: {}]
  %s1 = inlined_call_operand.vmem [shape: f32[3,64,64], index: 1, kind: input, shape index: {}]
  %s2 = inlined_call_operand.vmem [shape: f32[3,1,64], index: 2, kind: input, shape index: {}]
  %s3 = inlined_call_operand.vmem [shape: f32[256,32], index: 3, kind: output, shape index: {}]
  %s4 = sld [smem:[#allocation0]]
  $region22: #{tpu_custom_call.1} parent=0
    _
  %s6 = ssub.s32 1, %s4
  %s7 = scalar_select 0, %s6, %s4
  // Predicated region
  $region2: #{tpu_custom_call.1} parent=0 // pred_check
    _
  $region3: #{tpu_custom_call.1} parent=0 // pred_check_branch
    %9 = sbr.rel (0) target = $region5
  $region4: #{tpu_custom_call.1} parent=0 // pred_region
    _
  $region5: #{tpu_custom_call.1} parent=0 // pred_fallthru
    _
  // Predicated region
  $region6: #{tpu_custom_call.1} parent=0 // pred_check
    _
  $region7: #{tpu_custom_call.1} parent=0 // pred_check_branch
    %11 = sbr.rel (0) target = $region9
  $region8: #{tpu_custom_call.1} parent=0 // pred_region
    _
  $region9: #{tpu_custom_call.1} parent=0 // pred_fallthru
    _
  // Predicated region
  $region10: #{tpu_custom_call.1} parent=0 // pred_check
    _
  $region11: #{tpu_custom_call.1} parent=0 // pred_check_branch
    %13 = sbr.rel (0) target = $region13
  $region12: #{tpu_custom_call.1} parent=0 // pred_region
    _
  $region13: #{tpu_custom_call.1} parent=0 // pred_fallthru
    _
  %v14 = vld [vmem:[%s0] sm:$0xff]
  %v15 = vld [vmem:[%s0 + $0x8] sm:$0xff]
  %v16 = vld [vmem:[%s0 + $0x10] sm:$0xff]
  %v17 = vld [vmem:[%s0 + $0x18] sm:$0xff]
  %v18 = vld [vmem:[%s0 + $0x20] sm:$0xff]
  %v19 = vld [vmem:[%s0 + $0x28] sm:$0xff]
  %v20 = vld [vmem:[%s0 + $0x30] sm:$0xff]
  %v21 = vld [vmem:[%s0 + $0x38] sm:$0xff]
  %v22 = vld [vmem:[%s0 + $0x40] sm:$0xff]
  %v23 = vld [vmem:[%s0 + $0x48] sm:$0xff]
  %v24 = vld [vmem:[%s0 + $0x50] sm:$0xff]
  %v25 = vld [vmem:[%s0 + $0x58] sm:$0xff]
  %v26 = vld [vmem:[%s0 + $0x60] sm:$0xff]
  %v27 = vld [vmem:[%s0 + $0x68] sm:$0xff]
  %v28 = vld [vmem:[%s0 + $0x70] sm:$0xff]
  %v29 = vld [vmem:[%s0 + $0x78] sm:$0xff]
  %v30 = vld [vmem:[%s0 + $0x80] sm:$0xff]
  %v31 = vld [vmem:[%s0 + $0x88] sm:$0xff]
  %v32 = vld [vmem:[%s0 + $0x90] sm:$0xff]
  %v33 = vld [vmem:[%s0 + $0x98] sm:$0xff]
  %v34 = vld [vmem:[%s0 + $0xa0] sm:$0xff]
  %v35 = vld [vmem:[%s0 + $0xa8] sm:$0xff]
  %v36 = vld [vmem:[%s0 + $0xb0] sm:$0xff]
  %v37 = vld [vmem:[%s0 + $0xb8] sm:$0xff]
  %v38 = vld [vmem:[%s0 + $0xc0] sm:$0xff]
  %v39 = vld [vmem:[%s0 + $0xc8] sm:$0xff]
  %v40 = vld [vmem:[%s0 + $0xd0] sm:$0xff]
  %v41 = vld [vmem:[%s0 + $0xd8] sm:$0xff]
  %v42 = vld [vmem:[%s0 + $0xe0] sm:$0xff]
  %v43 = vld [vmem:[%s0 + $0xe8] sm:$0xff]
  %v44 = vld [vmem:[%s0 + $0xf0] sm:$0xff]
  %v45 = vld [vmem:[%s0 + $0xf8] sm:$0xff]
  %v46 = vld [vmem:[%s1] sm:$0xff]
  %v47 = vld [vmem:[%s1 + $0x8] sm:$0xff]
  %v48 = vld [vmem:[%s1 + $0x10] sm:$0xff]
  %v49 = vld [vmem:[%s1 + $0x18] sm:$0xff]
  %s50 = scalar_lea.vmem %s1, 64
  %v51 = vld [vmem:[%s50] sm:$0xff]
  %v52 = vld [vmem:[%s50 + $0x8] sm:$0xff]
  %v53 = vld [vmem:[%s50 + $0x10] sm:$0xff]
  %v54 = vld [vmem:[%s50 + $0x18] sm:$0xff]
  %v55 = vld [vmem:[%s50 + $0x20] sm:$0xff]
  %v56 = vld [vmem:[%s50 + $0x28] sm:$0xff]
  %v57 = vld [vmem:[%s50 + $0x30] sm:$0xff]
  %v58 = vld [vmem:[%s50 + $0x38] sm:$0xff]
  %s59 = scalar_lea.vmem %s1, 128
  %v60 = vld [vmem:[%s59] sm:$0xff]
  %v61 = vld [vmem:[%s59 + $0x8] sm:$0xff]
  %v62 = vld [vmem:[%s59 + $0x10] sm:$0xff]
  %v63 = vld [vmem:[%s59 + $0x18] sm:$0xff]
  %v64 = vld [vmem:[%s59 + $0x20] sm:$0xff]
  %v65 = vld [vmem:[%s59 + $0x28] sm:$0xff]
  %v66 = vld [vmem:[%s59 + $0x30] sm:$0xff]
  %v67 = vld [vmem:[%s59 + $0x38] sm:$0xff]
  %v68 = vld [vmem:[%s2] sm:$0x1]
  %v70 = vlaneseq
  %v71 = vshrl.u32 %v70, 7
  %v72 = vsub.s32 0, %v71
  %v73 = vrot.slane %v68, %v72
  %vm75 = vcmask 261120
  %v77 = vsel %vm75, %v14, 0
  %v80 = vsel %vm75, %v15, 0
  %v83 = vsel %vm75, %v16, 0
  %v86 = vsel %vm75, %v17, 0
  %v89 = vsel %vm75, %v18, 0
  %v92 = vsel %vm75, %v19, 0
  %v95 = vsel %vm75, %v20, 0
  %v98 = vsel %vm75, %v21, 0
  %v101 = vsel %vm75, %v22, 0
  %v104 = vsel %vm75, %v23, 0
  %v107 = vsel %vm75, %v24, 0
  %v110 = vsel %vm75, %v25, 0
  %v113 = vsel %vm75, %v26, 0
  %v116 = vsel %vm75, %v27, 0
  %v119 = vsel %vm75, %v28, 0
  %v122 = vsel %vm75, %v29, 0
  %v125 = vsel %vm75, %v30, 0
  %v128 = vsel %vm75, %v31, 0
  %v131 = vsel %vm75, %v32, 0
  %v134 = vsel %vm75, %v33, 0
  %v137 = vsel %vm75, %v34, 0
  %v140 = vsel %vm75, %v35, 0
  %v143 = vsel %vm75, %v36, 0
  %v146 = vsel %vm75, %v37, 0
  %v149 = vsel %vm75, %v38, 0
  %v152 = vsel %vm75, %v39, 0
  %v155 = vsel %vm75, %v40, 0
  %v158 = vsel %vm75, %v41, 0
  %v161 = vsel %vm75, %v42, 0
  %v164 = vsel %vm75, %v43, 0
  %v167 = vsel %vm75, %v44, 0
  %v170 = vsel %vm75, %v45, 0
  %172 = vmatprep.subr.mxu0 0.0
  %173 = vmatpush1.msra.mxu0 0.0
  %174 = vmatprep.subr.mxu0 0.0
  %175 = vmatpush1.msra.mxu0 0.0
  %176 = vmatprep.subr.mxu0 0.0
  %177 = vmatpush1.msra.mxu0 0.0
  %178 = vmatprep.subr.mxu0 0.0
  %179 = vmatpush1.msra.mxu0 0.0
  %180 = vmatprep.subr.mxu0 0.0
  %181 = vmatpush1.msra.mxu0 0.0
  %182 = vmatprep.subr.mxu0 0.0
  %183 = vmatpush1.msra.mxu0 0.0
  %184 = vmatprep.subr.mxu0 0.0
  %185 = vmatpush1.msra.mxu0 0.0
  %186 = vmatprep.subr.mxu0 0.0
  %187 = vmatpush1.msra.mxu0 0.0
  %188 = vmatprep.subr.mxu0 0.0
  %189 = vmatpush1.msra.mxu0 0.0
  %190 = vmatprep.subr.mxu0 0.0
  %191 = vmatpush1.msra.mxu0 0.0
  %192 = vmatprep.subr.mxu0 0.0
  %193 = vmatpush1.msra.mxu0 0.0
  %194 = vmatprep.subr.mxu0 0.0
  %195 = vmatpush1.msra.mxu0 0.0
  %196 = vmatprep.subr.mxu0 0.0
  %197 = vmatpush1.msra.mxu0 %v49
  %198 = vmatprep.subr.mxu0 0.0
  %199 = vmatpush1.msra.mxu0 %v48
  %200 = vmatprep.subr.mxu0 0.0
  %201 = vmatpush1.msra.mxu0 %v47
  %202 = vmatprep.subr.mxu0 0.0
  %203 = vmatpush1.msra.mxu0 %v46
  %204 = vmatprep.subr.mxu0 0.0
  %205 = vmatpush2.msra.mxu0 0.0
  %206 = vmatprep.subr.mxu0 0.0
  %207 = vmatpush2.msra.mxu0 0.0
  %208 = vmatprep.subr.mxu0 0.0
  %209 = vmatpush2.msra.mxu0 0.0
  %210 = vmatprep.subr.mxu0 0.0
  %211 = vmatpush2.msra.mxu0 0.0
  %212 = vmatprep.subr.mxu0 0.0
  %213 = vmatpush2.msra.mxu0 0.0
  %214 = vmatprep.subr.mxu0 0.0
  %215 = vmatpush2.msra.mxu0 0.0
  %216 = vmatprep.subr.mxu0 0.0
  %217 = vmatpush2.msra.mxu0 0.0
  %218 = vmatprep.subr.mxu0 0.0
  %219 = vmatpush2.msra.mxu0 0.0
  %220 = vmatprep.subr.mxu0 0.0
  %221 = vmatpush2.msra.mxu0 0.0
  %222 = vmatprep.subr.mxu0 0.0
  %223 = vmatpush2.msra.mxu0 0.0
  %224 = vmatprep.subr.mxu0 0.0
  %225 = vmatpush2.msra.mxu0 0.0
  %226 = vmatprep.subr.mxu0 0.0
  %227 = vmatpush2.msra.mxu0 0.0
  %228 = vmatprep.subr.mxu0 0.0
  %229 = vmatpush2.msra.mxu0 0.0
  %230 = vmatprep.subr.mxu0 0.0
  %231 = vmatpush2.msra.mxu0 0.0
  %232 = vmatprep.subr.mxu0 0.0
  %233 = vmatpush2.msra.mxu0 0.0
  %234 = vmatprep.subr.mxu0 0.0
  %235 = vmatpush2.msra.mxu0 0.0
  %236 = vmatprep.mubr.f32.mxu0 0.0
  %237 = vmatmul.mubr.f32.gmra.mxu0 %v77
  %v238 = vpop.f32.mrf.mxu0
  %v239 = vadd.f32 %v73, %v238
  %v240 = vpop.f32.mrf.mxu0
  %241 = vmatprep.mubr.f32.mxu0 0.0
  %242 = vmatmul.mubr.f32.gmra.mxu0 %v80
  %v243 = vpop.f32.mrf.mxu0
  %v244 = vadd.f32 %v73, %v243
  %v245 = vpop.f32.mrf.mxu0
  %246 = vmatprep.mubr.f32.mxu0 0.0
  %247 = vmatmul.mubr.f32.gmra.mxu0 %v83
  %v248 = vpop.f32.mrf.mxu0
  %v249 = vadd.f32 %v73, %v248
  %v250 = vpop.f32.mrf.mxu0
  %251 = vmatprep.mubr.f32.mxu0 0.0
  %252 = vmatmul.mubr.f32.gmra.mxu0 %v86
  %v253 = vpop.f32.mrf.mxu0
  %v254 = vadd.f32 %v73, %v253
  %v255 = vpop.f32.mrf.mxu0
  %256 = vmatprep.mubr.f32.mxu0 0.0
  %257 = vmatmul.mubr.f32.gmra.mxu0 %v89
  %v258 = vpop.f32.mrf.mxu0
  %v259 = vadd.f32 %v73, %v258
  %v260 = vpop.f32.mrf.mxu0
  %261 = vmatprep.mubr.f32.mxu0 0.0
  %262 = vmatmul.mubr.f32.gmra.mxu0 %v92
  %v263 = vpop.f32.mrf.mxu0
  %v264 = vadd.f32 %v73, %v263
  %v265 = vpop.f32.mrf.mxu0
  %266 = vmatprep.mubr.f32.mxu0 0.0
  %267 = vmatmul.mubr.f32.gmra.mxu0 %v95
  %v268 = vpop.f32.mrf.mxu0
  %v269 = vadd.f32 %v73, %v268
  %v270 = vpop.f32.mrf.mxu0
  %271 = vmatprep.mubr.f32.mxu0 0.0
  %272 = vmatmul.mubr.f32.gmra.mxu0 %v98
  %v273 = vpop.f32.mrf.mxu0
  %v274 = vadd.f32 %v73, %v273
  %v275 = vpop.f32.mrf.mxu0
  %276 = vmatprep.mubr.f32.mxu0 0.0
  %277 = vmatmul.mubr.f32.gmra.mxu0 %v101
  %v278 = vpop.f32.mrf.mxu0
  %v279 = vadd.f32 %v73, %v278
  %v280 = vpop.f32.mrf.mxu0
  %281 = vmatprep.mubr.f32.mxu0 0.0
  %282 = vmatmul.mubr.f32.gmra.mxu0 %v104
  %v283 = vpop.f32.mrf.mxu0
  %v284 = vadd.f32 %v73, %v283
  %v285 = vpop.f32.mrf.mxu0
  %286 = vmatprep.mubr.f32.mxu0 0.0
  %287 = vmatmul.mubr.f32.gmra.mxu0 %v107
  %v288 = vpop.f32.mrf.mxu0
  %v289 = vadd.f32 %v73, %v288
  %v290 = vpop.f32.mrf.mxu0
  %291 = vmatprep.mubr.f32.mxu0 0.0
  %292 = vmatmul.mubr.f32.gmra.mxu0 %v110
  %v293 = vpop.f32.mrf.mxu0
  %v294 = vadd.f32 %v73, %v293
  %v295 = vpop.f32.mrf.mxu0
  %296 = vmatprep.mubr.f32.mxu0 0.0
  %297 = vmatmul.mubr.f32.gmra.mxu0 %v113
  %v298 = vpop.f32.mrf.mxu0
  %v299 = vadd.f32 %v73, %v298
  %v300 = vpop.f32.mrf.mxu0
  %301 = vmatprep.mubr.f32.mxu0 0.0
  %302 = vmatmul.mubr.f32.gmra.mxu0 %v116
  %v303 = vpop.f32.mrf.mxu0
  %v304 = vadd.f32 %v73, %v303
  %v305 = vpop.f32.mrf.mxu0
  %306 = vmatprep.mubr.f32.mxu0 0.0
  %307 = vmatmul.mubr.f32.gmra.mxu0 %v119
  %v308 = vpop.f32.mrf.mxu0
  %v309 = vadd.f32 %v73, %v308
  %v310 = vpop.f32.mrf.mxu0
  %311 = vmatprep.mubr.f32.mxu0 0.0
  %312 = vmatmul.mubr.f32.gmra.mxu0 %v122
  %v313 = vpop.f32.mrf.mxu0
  %v314 = vadd.f32 %v73, %v313
  %v315 = vpop.f32.mrf.mxu0
  %316 = vmatprep.mubr.f32.mxu0 0.0
  %317 = vmatmul.mubr.f32.gmra.mxu0 %v125
  %v318 = vpop.f32.mrf.mxu0
  %v319 = vadd.f32 %v73, %v318
  %v320 = vpop.f32.mrf.mxu0
  %321 = vmatprep.mubr.f32.mxu0 0.0
  %322 = vmatmul.mubr.f32.gmra.mxu0 %v128
  %v323 = vpop.f32.mrf.mxu0
  %v324 = vadd.f32 %v73, %v323
  %v325 = vpop.f32.mrf.mxu0
  %326 = vmatprep.mubr.f32.mxu0 0.0
  %327 = vmatmul.mubr.f32.gmra.mxu0 %v131
  %v328 = vpop.f32.mrf.mxu0
  %v329 = vadd.f32 %v73, %v328
  %v330 = vpop.f32.mrf.mxu0
  %331 = vmatprep.mubr.f32.mxu0 0.0
  %332 = vmatmul.mubr.f32.gmra.mxu0 %v134
  %v333 = vpop.f32.mrf.mxu0
  %v334 = vadd.f32 %v73, %v333
  %v335 = vpop.f32.mrf.mxu0
  %336 = vmatprep.mubr.f32.mxu0 0.0
  %337 = vmatmul.mubr.f32.gmra.mxu0 %v137
  %v338 = vpop.f32.mrf.mxu0
  %v339 = vadd.f32 %v73, %v338
  %v340 = vpop.f32.mrf.mxu0
  %341 = vmatprep.mubr.f32.mxu0 0.0
  %342 = vmatmul.mubr.f32.gmra.mxu0 %v140
  %v343 = vpop.f32.mrf.mxu0
  %v344 = vadd.f32 %v73, %v343
  %v345 = vpop.f32.mrf.mxu0
  %346 = vmatprep.mubr.f32.mxu0 0.0
  %347 = vmatmul.mubr.f32.gmra.mxu0 %v143
  %v348 = vpop.f32.mrf.mxu0
  %v349 = vadd.f32 %v73, %v348
  %v350 = vpop.f32.mrf.mxu0
  %351 = vmatprep.mubr.f32.mxu0 0.0
  %352 = vmatmul.mubr.f32.gmra.mxu0 %v146
  %v353 = vpop.f32.mrf.mxu0
  %v354 = vadd.f32 %v73, %v353
  %v355 = vpop.f32.mrf.mxu0
  %356 = vmatprep.mubr.f32.mxu0 0.0
  %357 = vmatmul.mubr.f32.gmra.mxu0 %v149
  %v358 = vpop.f32.mrf.mxu0
  %v359 = vadd.f32 %v73, %v358
  %v360 = vpop.f32.mrf.mxu0
  %361 = vmatprep.mubr.f32.mxu0 0.0
  %362 = vmatmul.mubr.f32.gmra.mxu0 %v152
  %v363 = vpop.f32.mrf.mxu0
  %v364 = vadd.f32 %v73, %v363
  %v365 = vpop.f32.mrf.mxu0
  %366 = vmatprep.mubr.f32.mxu0 0.0
  %367 = vmatmul.mubr.f32.gmra.mxu0 %v155
  %v368 = vpop.f32.mrf.mxu0
  %v369 = vadd.f32 %v73, %v368
  %v370 = vpop.f32.mrf.mxu0
  %371 = vmatprep.mubr.f32.mxu0 0.0
  %372 = vmatmul.mubr.f32.gmra.mxu0 %v158
  %v373 = vpop.f32.mrf.mxu0
  %v374 = vadd.f32 %v73, %v373
  %v375 = vpop.f32.mrf.mxu0
  %376 = vmatprep.mubr.f32.mxu0 0.0
  %377 = vmatmul.mubr.f32.gmra.mxu0 %v161
  %v378 = vpop.f32.mrf.mxu0
  %v379 = vadd.f32 %v73, %v378
  %v380 = vpop.f32.mrf.mxu0
  %381 = vmatprep.mubr.f32.mxu0 0.0
  %382 = vmatmul.mubr.f32.gmra.mxu0 %v164
  %v383 = vpop.f32.mrf.mxu0
  %v384 = vadd.f32 %v73, %v383
  %v385 = vpop.f32.mrf.mxu0
  %386 = vmatprep.mubr.f32.mxu0 0.0
  %387 = vmatmul.mubr.f32.gmra.mxu0 %v167
  %v388 = vpop.f32.mrf.mxu0
  %v389 = vadd.f32 %v73, %v388
  %v390 = vpop.f32.mrf.mxu0
  %391 = vmatprep.mubr.f32.mxu0 0.0
  %392 = vmatmul.mubr.f32.gmra.mxu0 %v170
  %v393 = vpop.f32.mrf.mxu0
  %v394 = vadd.f32 %v73, %v393
  %v395 = vpop.f32.mrf.mxu0
  %396 = vdwg.mxu0
  %v397 = vmax.f32 %v239, 0.0
  %v398 = vmax.f32 %v244, 0.0
  %v399 = vmax.f32 %v249, 0.0
  %v400 = vmax.f32 %v254, 0.0
  %v401 = vmax.f32 %v259, 0.0
  %v402 = vmax.f32 %v264, 0.0
  %v403 = vmax.f32 %v269, 0.0
  %v404 = vmax.f32 %v274, 0.0
  %v405 = vmax.f32 %v279, 0.0
  %v406 = vmax.f32 %v284, 0.0
  %v407 = vmax.f32 %v289, 0.0
  %v408 = vmax.f32 %v294, 0.0
  %v409 = vmax.f32 %v299, 0.0
  %v410 = vmax.f32 %v304, 0.0
  %v411 = vmax.f32 %v309, 0.0
  %v412 = vmax.f32 %v314, 0.0
  %v413 = vmax.f32 %v319, 0.0
  %v414 = vmax.f32 %v324, 0.0
  %v415 = vmax.f32 %v329, 0.0
  %v416 = vmax.f32 %v334, 0.0
  %v417 = vmax.f32 %v339, 0.0
  %v418 = vmax.f32 %v344, 0.0
  %v419 = vmax.f32 %v349, 0.0
  %v420 = vmax.f32 %v354, 0.0
  %v421 = vmax.f32 %v359, 0.0
  %v422 = vmax.f32 %v364, 0.0
  %v423 = vmax.f32 %v369, 0.0
  %v424 = vmax.f32 %v374, 0.0
  %v425 = vmax.f32 %v379, 0.0
  %v426 = vmax.f32 %v384, 0.0
  %v427 = vmax.f32 %v389, 0.0
  %v428 = vmax.f32 %v394, 0.0
  %s429 = scalar_lea.vmem %s2, 1
  %v430 = vld [vmem:[%s429] sm:$0x1]
  %v432 = vlaneseq
  %v433 = vshrl.u32 %v432, 7
  %v434 = vsub.s32 0, %v433
  %v435 = vrot.slane %v430, %v434
  %vm437 = vcmask 523264
  %v439 = vsel %vm437, %v397, 0
  %v442 = vsel %vm437, %v398, 0
  %v445 = vsel %vm437, %v399, 0
  %v448 = vsel %vm437, %v400, 0
  %v451 = vsel %vm437, %v401, 0
  %v454 = vsel %vm437, %v402, 0
  %v457 = vsel %vm437, %v403, 0
  %v460 = vsel %vm437, %v404, 0
  %v463 = vsel %vm437, %v405, 0
  %v466 = vsel %vm437, %v406, 0
  %v469 = vsel %vm437, %v407, 0
  %v472 = vsel %vm437, %v408, 0
  %v475 = vsel %vm437, %v409, 0
  %v478 = vsel %vm437, %v410, 0
  %v481 = vsel %vm437, %v411, 0
  %v484 = vsel %vm437, %v412, 0
  %v487 = vsel %vm437, %v413, 0
  %v490 = vsel %vm437, %v414, 0
  %v493 = vsel %vm437, %v415, 0
  %v496 = vsel %vm437, %v416, 0
  %v499 = vsel %vm437, %v417, 0
  %v502 = vsel %vm437, %v418, 0
  %v505 = vsel %vm437, %v419, 0
  %v508 = vsel %vm437, %v420, 0
  %v511 = vsel %vm437, %v421, 0
  %v514 = vsel %vm437, %v422, 0
  %v517 = vsel %vm437, %v423, 0
  %v520 = vsel %vm437, %v424, 0
  %v523 = vsel %vm437, %v425, 0
  %v526 = vsel %vm437, %v426, 0
  %v529 = vsel %vm437, %v427, 0
  %v532 = vsel %vm437, %v428, 0
  %534 = vmatprep.subr.mxu0 0.0
  %535 = vmatpush1.msra.mxu0 0.0
  %536 = vmatprep.subr.mxu0 0.0
  %537 = vmatpush1.msra.mxu0 0.0
  %538 = vmatprep.subr.mxu0 0.0
  %539 = vmatpush1.msra.mxu0 0.0
  %540 = vmatprep.subr.mxu0 0.0
  %541 = vmatpush1.msra.mxu0 0.0
  %542 = vmatprep.subr.mxu0 0.0
  %543 = vmatpush1.msra.mxu0 0.0
  %544 = vmatprep.subr.mxu0 0.0
  %545 = vmatpush1.msra.mxu0 0.0
  %546 = vmatprep.subr.mxu0 0.0
  %547 = vmatpush1.msra.mxu0 0.0
  %548 = vmatprep.subr.mxu0 0.0
  %549 = vmatpush1.msra.mxu0 0.0
  %550 = vmatprep.subr.mxu0 0.0
  %551 = vmatpush1.msra.mxu0 %v58
  %552 = vmatprep.subr.mxu0 0.0
  %553 = vmatpush1.msra.mxu0 %v57
  %554 = vmatprep.subr.mxu0 0.0
  %555 = vmatpush1.msra.mxu0 %v56
  %556 = vmatprep.subr.mxu0 0.0
  %557 = vmatpush1.msra.mxu0 %v55
  %558 = vmatprep.subr.mxu0 0.0
  %559 = vmatpush1.msra.mxu0 %v54
  %560 = vmatprep.subr.mxu0 0.0
  %561 = vmatpush1.msra.mxu0 %v53
  %562 = vmatprep.subr.mxu0 0.0
  %563 = vmatpush1.msra.mxu0 %v52
  %564 = vmatprep.subr.mxu0 0.0
  %565 = vmatpush1.msra.mxu0 %v51
  %566 = vmatprep.subr.mxu0 0.0
  %567 = vmatpush2.msra.mxu0 0.0
  %568 = vmatprep.subr.mxu0 0.0
  %569 = vmatpush2.msra.mxu0 0.0
  %570 = vmatprep.subr.mxu0 0.0
  %571 = vmatpush2.msra.mxu0 0.0
  %572 = vmatprep.subr.mxu0 0.0
  %573 = vmatpush2.msra.mxu0 0.0
  %574 = vmatprep.subr.mxu0 0.0
  %575 = vmatpush2.msra.mxu0 0.0
  %576 = vmatprep.subr.mxu0 0.0
  %577 = vmatpush2.msra.mxu0 0.0
  %578 = vmatprep.subr.mxu0 0.0
  %579 = vmatpush2.msra.mxu0 0.0
  %580 = vmatprep.subr.mxu0 0.0
  %581 = vmatpush2.msra.mxu0 0.0
  %582 = vmatprep.subr.mxu0 0.0
  %583 = vmatpush2.msra.mxu0 0.0
  %584 = vmatprep.subr.mxu0 0.0
  %585 = vmatpush2.msra.mxu0 0.0
  %586 = vmatprep.subr.mxu0 0.0
  %587 = vmatpush2.msra.mxu0 0.0
  %588 = vmatprep.subr.mxu0 0.0
  %589 = vmatpush2.msra.mxu0 0.0
  %590 = vmatprep.subr.mxu0 0.0
  %591 = vmatpush2.msra.mxu0 0.0
  %592 = vmatprep.subr.mxu0 0.0
  %593 = vmatpush2.msra.mxu0 0.0
  %594 = vmatprep.subr.mxu0 0.0
  %595 = vmatpush2.msra.mxu0 0.0
  %596 = vmatprep.subr.mxu0 0.0
  %597 = vmatpush2.msra.mxu0 0.0
  %598 = vmatprep.mubr.f32.mxu0 0.0
  %599 = vmatmul.mubr.f32.gmra.mxu0 %v439
  %v600 = vpop.f32.mrf.mxu0
  %v601 = vadd.f32 %v435, %v600
  %v602 = vpop.f32.mrf.mxu0
  %603 = vmatprep.mubr.f32.mxu0 0.0
  %604 = vmatmul.mubr.f32.gmra.mxu0 %v442
  %v605 = vpop.f32.mrf.mxu0
  %v606 = vadd.f32 %v435, %v605
  %v607 = vpop.f32.mrf.mxu0
  %608 = vmatprep.mubr.f32.mxu0 0.0
  %609 = vmatmul.mubr.f32.gmra.mxu0 %v445
  %v610 = vpop.f32.mrf.mxu0
  %v611 = vadd.f32 %v435, %v610
  %v612 = vpop.f32.mrf.mxu0
  %613 = vmatprep.mubr.f32.mxu0 0.0
  %614 = vmatmul.mubr.f32.gmra.mxu0 %v448
  %v615 = vpop.f32.mrf.mxu0
  %v616 = vadd.f32 %v435, %v615
  %v617 = vpop.f32.mrf.mxu0
  %618 = vmatprep.mubr.f32.mxu0 0.0
  %619 = vmatmul.mubr.f32.gmra.mxu0 %v451
  %v620 = vpop.f32.mrf.mxu0
  %v621 = vadd.f32 %v435, %v620
  %v622 = vpop.f32.mrf.mxu0
  %623 = vmatprep.mubr.f32.mxu0 0.0
  %624 = vmatmul.mubr.f32.gmra.mxu0 %v454
  %v625 = vpop.f32.mrf.mxu0
  %v626 = vadd.f32 %v435, %v625
  %v627 = vpop.f32.mrf.mxu0
  %628 = vmatprep.mubr.f32.mxu0 0.0
  %629 = vmatmul.mubr.f32.gmra.mxu0 %v457
  %v630 = vpop.f32.mrf.mxu0
  %v631 = vadd.f32 %v435, %v630
  %v632 = vpop.f32.mrf.mxu0
  %633 = vmatprep.mubr.f32.mxu0 0.0
  %634 = vmatmul.mubr.f32.gmra.mxu0 %v460
  %v635 = vpop.f32.mrf.mxu0
  %v636 = vadd.f32 %v435, %v635
  %v637 = vpop.f32.mrf.mxu0
  %638 = vmatprep.mubr.f32.mxu0 0.0
  %639 = vmatmul.mubr.f32.gmra.mxu0 %v463
  %v640 = vpop.f32.mrf.mxu0
  %v641 = vadd.f32 %v435, %v640
  %v642 = vpop.f32.mrf.mxu0
  %643 = vmatprep.mubr.f32.mxu0 0.0
  %644 = vmatmul.mubr.f32.gmra.mxu0 %v466
  %v645 = vpop.f32.mrf.mxu0
  %v646 = vadd.f32 %v435, %v645
  %v647 = vpop.f32.mrf.mxu0
  %648 = vmatprep.mubr.f32.mxu0 0.0
  %649 = vmatmul.mubr.f32.gmra.mxu0 %v469
  %v650 = vpop.f32.mrf.mxu0
  %v651 = vadd.f32 %v435, %v650
  %v652 = vpop.f32.mrf.mxu0
  %653 = vmatprep.mubr.f32.mxu0 0.0
  %654 = vmatmul.mubr.f32.gmra.mxu0 %v472
  %v655 = vpop.f32.mrf.mxu0
  %v656 = vadd.f32 %v435, %v655
  %v657 = vpop.f32.mrf.mxu0
  %658 = vmatprep.mubr.f32.mxu0 0.0
  %659 = vmatmul.mubr.f32.gmra.mxu0 %v475
  %v660 = vpop.f32.mrf.mxu0
  %v661 = vadd.f32 %v435, %v660
  %v662 = vpop.f32.mrf.mxu0
  %663 = vmatprep.mubr.f32.mxu0 0.0
  %664 = vmatmul.mubr.f32.gmra.mxu0 %v478
  %v665 = vpop.f32.mrf.mxu0
  %v666 = vadd.f32 %v435, %v665
  %v667 = vpop.f32.mrf.mxu0
  %668 = vmatprep.mubr.f32.mxu0 0.0
  %669 = vmatmul.mubr.f32.gmra.mxu0 %v481
  %v670 = vpop.f32.mrf.mxu0
  %v671 = vadd.f32 %v435, %v670
  %v672 = vpop.f32.mrf.mxu0
  %673 = vmatprep.mubr.f32.mxu0 0.0
  %674 = vmatmul.mubr.f32.gmra.mxu0 %v484
  %v675 = vpop.f32.mrf.mxu0
  %v676 = vadd.f32 %v435, %v675
  %v677 = vpop.f32.mrf.mxu0
  %678 = vmatprep.mubr.f32.mxu0 0.0
  %679 = vmatmul.mubr.f32.gmra.mxu0 %v487
  %v680 = vpop.f32.mrf.mxu0
  %v681 = vadd.f32 %v435, %v680
  %v682 = vpop.f32.mrf.mxu0
  %683 = vmatprep.mubr.f32.mxu0 0.0
  %684 = vmatmul.mubr.f32.gmra.mxu0 %v490
  %v685 = vpop.f32.mrf.mxu0
  %v686 = vadd.f32 %v435, %v685
  %v687 = vpop.f32.mrf.mxu0
  %688 = vmatprep.mubr.f32.mxu0 0.0
  %689 = vmatmul.mubr.f32.gmra.mxu0 %v493
  %v690 = vpop.f32.mrf.mxu0
  %v691 = vadd.f32 %v435, %v690
  %v692 = vpop.f32.mrf.mxu0
  %693 = vmatprep.mubr.f32.mxu0 0.0
  %694 = vmatmul.mubr.f32.gmra.mxu0 %v496
  %v695 = vpop.f32.mrf.mxu0
  %v696 = vadd.f32 %v435, %v695
  %v697 = vpop.f32.mrf.mxu0
  %698 = vmatprep.mubr.f32.mxu0 0.0
  %699 = vmatmul.mubr.f32.gmra.mxu0 %v499
  %v700 = vpop.f32.mrf.mxu0
  %v701 = vadd.f32 %v435, %v700
  %v702 = vpop.f32.mrf.mxu0
  %703 = vmatprep.mubr.f32.mxu0 0.0
  %704 = vmatmul.mubr.f32.gmra.mxu0 %v502
  %v705 = vpop.f32.mrf.mxu0
  %v706 = vadd.f32 %v435, %v705
  %v707 = vpop.f32.mrf.mxu0
  %708 = vmatprep.mubr.f32.mxu0 0.0
  %709 = vmatmul.mubr.f32.gmra.mxu0 %v505
  %v710 = vpop.f32.mrf.mxu0
  %v711 = vadd.f32 %v435, %v710
  %v712 = vpop.f32.mrf.mxu0
  %713 = vmatprep.mubr.f32.mxu0 0.0
  %714 = vmatmul.mubr.f32.gmra.mxu0 %v508
  %v715 = vpop.f32.mrf.mxu0
  %v716 = vadd.f32 %v435, %v715
  %v717 = vpop.f32.mrf.mxu0
  %718 = vmatprep.mubr.f32.mxu0 0.0
  %719 = vmatmul.mubr.f32.gmra.mxu0 %v511
  %v720 = vpop.f32.mrf.mxu0
  %v721 = vadd.f32 %v435, %v720
  %v722 = vpop.f32.mrf.mxu0
  %723 = vmatprep.mubr.f32.mxu0 0.0
  %724 = vmatmul.mubr.f32.gmra.mxu0 %v514
  %v725 = vpop.f32.mrf.mxu0
  %v726 = vadd.f32 %v435, %v725
  %v727 = vpop.f32.mrf.mxu0
  %728 = vmatprep.mubr.f32.mxu0 0.0
  %729 = vmatmul.mubr.f32.gmra.mxu0 %v517
  %v730 = vpop.f32.mrf.mxu0
  %v731 = vadd.f32 %v435, %v730
  %v732 = vpop.f32.mrf.mxu0
  %733 = vmatprep.mubr.f32.mxu0 0.0
  %734 = vmatmul.mubr.f32.gmra.mxu0 %v520
  %v735 = vpop.f32.mrf.mxu0
  %v736 = vadd.f32 %v435, %v735
  %v737 = vpop.f32.mrf.mxu0
  %738 = vmatprep.mubr.f32.mxu0 0.0
  %739 = vmatmul.mubr.f32.gmra.mxu0 %v523
  %v740 = vpop.f32.mrf.mxu0
  %v741 = vadd.f32 %v435, %v740
  %v742 = vpop.f32.mrf.mxu0
  %743 = vmatprep.mubr.f32.mxu0 0.0
  %744 = vmatmul.mubr.f32.gmra.mxu0 %v526
  %v745 = vpop.f32.mrf.mxu0
  %v746 = vadd.f32 %v435, %v745
  %v747 = vpop.f32.mrf.mxu0
  %748 = vmatprep.mubr.f32.mxu0 0.0
  %749 = vmatmul.mubr.f32.gmra.mxu0 %v529
  %v750 = vpop.f32.mrf.mxu0
  %v751 = vadd.f32 %v435, %v750
  %v752 = vpop.f32.mrf.mxu0
  %753 = vmatprep.mubr.f32.mxu0 0.0
  %754 = vmatmul.mubr.f32.gmra.mxu0 %v532
  %v755 = vpop.f32.mrf.mxu0
  %v756 = vadd.f32 %v435, %v755
  %v757 = vpop.f32.mrf.mxu0
  %758 = vdwg.mxu0
  %v759 = vmax.f32 %v601, 0.0
  %v760 = vmax.f32 %v606, 0.0
  %v761 = vmax.f32 %v611, 0.0
  %v762 = vmax.f32 %v616, 0.0
  %v763 = vmax.f32 %v621, 0.0
  %v764 = vmax.f32 %v626, 0.0
  %v765 = vmax.f32 %v631, 0.0
  %v766 = vmax.f32 %v636, 0.0
  %v767 = vmax.f32 %v641, 0.0
  %v768 = vmax.f32 %v646, 0.0
  %v769 = vmax.f32 %v651, 0.0
  %v770 = vmax.f32 %v656, 0.0
  %v771 = vmax.f32 %v661, 0.0
  %v772 = vmax.f32 %v666, 0.0
  %v773 = vmax.f32 %v671, 0.0
  %v774 = vmax.f32 %v676, 0.0
  %v775 = vmax.f32 %v681, 0.0
  %v776 = vmax.f32 %v686, 0.0
  %v777 = vmax.f32 %v691, 0.0
  %v778 = vmax.f32 %v696, 0.0
  %v779 = vmax.f32 %v701, 0.0
  %v780 = vmax.f32 %v706, 0.0
  %v781 = vmax.f32 %v711, 0.0
  %v782 = vmax.f32 %v716, 0.0
  %v783 = vmax.f32 %v721, 0.0
  %v784 = vmax.f32 %v726, 0.0
  %v785 = vmax.f32 %v731, 0.0
  %v786 = vmax.f32 %v736, 0.0
  %v787 = vmax.f32 %v741, 0.0
  %v788 = vmax.f32 %v746, 0.0
  %v789 = vmax.f32 %v751, 0.0
  %v790 = vmax.f32 %v756, 0.0
  %s791 = scalar_lea.vmem %s2, 2
  %v792 = vld [vmem:[%s791] sm:$0x1]
  %v794 = vlaneseq
  %v795 = vshrl.u32 %v794, 7
  %v796 = vsub.s32 0, %v795
  %v797 = vrot.slane %v792, %v796
  %v800 = vsel %vm437, %v759, 0
  %v803 = vsel %vm437, %v760, 0
  %v806 = vsel %vm437, %v761, 0
  %v809 = vsel %vm437, %v762, 0
  %v812 = vsel %vm437, %v763, 0
  %v815 = vsel %vm437, %v764, 0
  %v818 = vsel %vm437, %v765, 0
  %v821 = vsel %vm437, %v766, 0
  %v824 = vsel %vm437, %v767, 0
  %v827 = vsel %vm437, %v768, 0
  %v830 = vsel %vm437, %v769, 0
  %v833 = vsel %vm437, %v770, 0
  %v836 = vsel %vm437, %v771, 0
  %v839 = vsel %vm437, %v772, 0
  %v842 = vsel %vm437, %v773, 0
  %v845 = vsel %vm437, %v774, 0
  %v848 = vsel %vm437, %v775, 0
  %v851 = vsel %vm437, %v776, 0
  %v854 = vsel %vm437, %v777, 0
  %v857 = vsel %vm437, %v778, 0
  %v860 = vsel %vm437, %v779, 0
  %v863 = vsel %vm437, %v780, 0
  %v866 = vsel %vm437, %v781, 0
  %v869 = vsel %vm437, %v782, 0
  %v872 = vsel %vm437, %v783, 0
  %v875 = vsel %vm437, %v784, 0
  %v878 = vsel %vm437, %v785, 0
  %v881 = vsel %vm437, %v786, 0
  %v884 = vsel %vm437, %v787, 0
  %v887 = vsel %vm437, %v788, 0
  %v890 = vsel %vm437, %v789, 0
  %v893 = vsel %vm437, %v790, 0
  %895 = vmatprep.subr.mxu0 0.0
  %896 = vmatpush1.msra.mxu0 0.0
  %897 = vmatprep.subr.mxu0 0.0
  %898 = vmatpush1.msra.mxu0 0.0
  %899 = vmatprep.subr.mxu0 0.0
  %900 = vmatpush1.msra.mxu0 0.0
  %901 = vmatprep.subr.mxu0 0.0
  %902 = vmatpush1.msra.mxu0 0.0
  %903 = vmatprep.subr.mxu0 0.0
  %904 = vmatpush1.msra.mxu0 0.0
  %905 = vmatprep.subr.mxu0 0.0
  %906 = vmatpush1.msra.mxu0 0.0
  %907 = vmatprep.subr.mxu0 0.0
  %908 = vmatpush1.msra.mxu0 0.0
  %909 = vmatprep.subr.mxu0 0.0
  %910 = vmatpush1.msra.mxu0 0.0
  %911 = vmatprep.subr.mxu0 0.0
  %912 = vmatpush1.msra.mxu0 %v67
  %913 = vmatprep.subr.mxu0 0.0
  %914 = vmatpush1.msra.mxu0 %v66
  %915 = vmatprep.subr.mxu0 0.0
  %916 = vmatpush1.msra.mxu0 %v65
  %917 = vmatprep.subr.mxu0 0.0
  %918 = vmatpush1.msra.mxu0 %v64
  %919 = vmatprep.subr.mxu0 0.0
  %920 = vmatpush1.msra.mxu0 %v63
  %921 = vmatprep.subr.mxu0 0.0
  %922 = vmatpush1.msra.mxu0 %v62
  %923 = vmatprep.subr.mxu0 0.0
  %924 = vmatpush1.msra.mxu0 %v61
  %925 = vmatprep.subr.mxu0 0.0
  %926 = vmatpush1.msra.mxu0 %v60
  %927 = vmatprep.subr.mxu0 0.0
  %928 = vmatpush2.msra.mxu0 0.0
  %929 = vmatprep.subr.mxu0 0.0
  %930 = vmatpush2.msra.mxu0 0.0
  %931 = vmatprep.subr.mxu0 0.0
  %932 = vmatpush2.msra.mxu0 0.0
  %933 = vmatprep.subr.mxu0 0.0
  %934 = vmatpush2.msra.mxu0 0.0
  %935 = vmatprep.subr.mxu0 0.0
  %936 = vmatpush2.msra.mxu0 0.0
  %937 = vmatprep.subr.mxu0 0.0
  %938 = vmatpush2.msra.mxu0 0.0
  %939 = vmatprep.subr.mxu0 0.0
  %940 = vmatpush2.msra.mxu0 0.0
  %941 = vmatprep.subr.mxu0 0.0
  %942 = vmatpush2.msra.mxu0 0.0
  %943 = vmatprep.subr.mxu0 0.0
  %944 = vmatpush2.msra.mxu0 0.0
  %945 = vmatprep.subr.mxu0 0.0
  %946 = vmatpush2.msra.mxu0 0.0
  %947 = vmatprep.subr.mxu0 0.0
  %948 = vmatpush2.msra.mxu0 0.0
  %949 = vmatprep.subr.mxu0 0.0
  %950 = vmatpush2.msra.mxu0 0.0
  %951 = vmatprep.subr.mxu0 0.0
  %952 = vmatpush2.msra.mxu0 0.0
  %953 = vmatprep.subr.mxu0 0.0
  %954 = vmatpush2.msra.mxu0 0.0
  %955 = vmatprep.subr.mxu0 0.0
  %956 = vmatpush2.msra.mxu0 0.0
  %957 = vmatprep.subr.mxu0 0.0
  %958 = vmatpush2.msra.mxu0 0.0
  %959 = vmatprep.mubr.f32.mxu0 0.0
  %960 = vmatmul.mubr.f32.gmra.mxu0 %v800
  %v961 = vpop.f32.mrf.mxu0
  %v962 = vadd.f32 %v797, %v961
  %v963 = vpop.f32.mrf.mxu0
  %964 = vmatprep.mubr.f32.mxu0 0.0
  %965 = vmatmul.mubr.f32.gmra.mxu0 %v803
  %v966 = vpop.f32.mrf.mxu0
  %v967 = vadd.f32 %v797, %v966
  %v968 = vpop.f32.mrf.mxu0
  %969 = vmatprep.mubr.f32.mxu0 0.0
  %970 = vmatmul.mubr.f32.gmra.mxu0 %v806
  %v971 = vpop.f32.mrf.mxu0
  %v972 = vadd.f32 %v797, %v971
  %v973 = vpop.f32.mrf.mxu0
  %974 = vmatprep.mubr.f32.mxu0 0.0
  %975 = vmatmul.mubr.f32.gmra.mxu0 %v809
  %v976 = vpop.f32.mrf.mxu0
  %v977 = vadd.f32 %v797, %v976
  %v978 = vpop.f32.mrf.mxu0
  %979 = vmatprep.mubr.f32.mxu0 0.0
  %980 = vmatmul.mubr.f32.gmra.mxu0 %v812
  %v981 = vpop.f32.mrf.mxu0
  %v982 = vadd.f32 %v797, %v981
  %v983 = vpop.f32.mrf.mxu0
  %984 = vmatprep.mubr.f32.mxu0 0.0
  %985 = vmatmul.mubr.f32.gmra.mxu0 %v815
  %v986 = vpop.f32.mrf.mxu0
  %v987 = vadd.f32 %v797, %v986
  %v988 = vpop.f32.mrf.mxu0
  %989 = vmatprep.mubr.f32.mxu0 0.0
  %990 = vmatmul.mubr.f32.gmra.mxu0 %v818
  %v991 = vpop.f32.mrf.mxu0
  %v992 = vadd.f32 %v797, %v991
  %v993 = vpop.f32.mrf.mxu0
  %994 = vmatprep.mubr.f32.mxu0 0.0
  %995 = vmatmul.mubr.f32.gmra.mxu0 %v821
  %v996 = vpop.f32.mrf.mxu0
  %v997 = vadd.f32 %v797, %v996
  %v998 = vpop.f32.mrf.mxu0
  %999 = vmatprep.mubr.f32.mxu0 0.0
  %1000 = vmatmul.mubr.f32.gmra.mxu0 %v824
  %v1001 = vpop.f32.mrf.mxu0
  %v1002 = vadd.f32 %v797, %v1001
  %v1003 = vpop.f32.mrf.mxu0
  %1004 = vmatprep.mubr.f32.mxu0 0.0
  %1005 = vmatmul.mubr.f32.gmra.mxu0 %v827
  %v1006 = vpop.f32.mrf.mxu0
  %v1007 = vadd.f32 %v797, %v1006
  %v1008 = vpop.f32.mrf.mxu0
  %1009 = vmatprep.mubr.f32.mxu0 0.0
  %1010 = vmatmul.mubr.f32.gmra.mxu0 %v830
  %v1011 = vpop.f32.mrf.mxu0
  %v1012 = vadd.f32 %v797, %v1011
  %v1013 = vpop.f32.mrf.mxu0
  %1014 = vmatprep.mubr.f32.mxu0 0.0
  %1015 = vmatmul.mubr.f32.gmra.mxu0 %v833
  %v1016 = vpop.f32.mrf.mxu0
  %v1017 = vadd.f32 %v797, %v1016
  %v1018 = vpop.f32.mrf.mxu0
  %1019 = vmatprep.mubr.f32.mxu0 0.0
  %1020 = vmatmul.mubr.f32.gmra.mxu0 %v836
  %v1021 = vpop.f32.mrf.mxu0
  %v1022 = vadd.f32 %v797, %v1021
  %v1023 = vpop.f32.mrf.mxu0
  %1024 = vmatprep.mubr.f32.mxu0 0.0
  %1025 = vmatmul.mubr.f32.gmra.mxu0 %v839
  %v1026 = vpop.f32.mrf.mxu0
  %v1027 = vadd.f32 %v797, %v1026
  %v1028 = vpop.f32.mrf.mxu0
  %1029 = vmatprep.mubr.f32.mxu0 0.0
  %1030 = vmatmul.mubr.f32.gmra.mxu0 %v842
  %v1031 = vpop.f32.mrf.mxu0
  %v1032 = vadd.f32 %v797, %v1031
  %v1033 = vpop.f32.mrf.mxu0
  %1034 = vmatprep.mubr.f32.mxu0 0.0
  %1035 = vmatmul.mubr.f32.gmra.mxu0 %v845
  %v1036 = vpop.f32.mrf.mxu0
  %v1037 = vadd.f32 %v797, %v1036
  %v1038 = vpop.f32.mrf.mxu0
  %1039 = vmatprep.mubr.f32.mxu0 0.0
  %1040 = vmatmul.mubr.f32.gmra.mxu0 %v848
  %v1041 = vpop.f32.mrf.mxu0
  %v1042 = vadd.f32 %v797, %v1041
  %v1043 = vpop.f32.mrf.mxu0
  %1044 = vmatprep.mubr.f32.mxu0 0.0
  %1045 = vmatmul.mubr.f32.gmra.mxu0 %v851
  %v1046 = vpop.f32.mrf.mxu0
  %v1047 = vadd.f32 %v797, %v1046
  %v1048 = vpop.f32.mrf.mxu0
  %1049 = vmatprep.mubr.f32.mxu0 0.0
  %1050 = vmatmul.mubr.f32.gmra.mxu0 %v854
  %v1051 = vpop.f32.mrf.mxu0
  %v1052 = vadd.f32 %v797, %v1051
  %v1053 = vpop.f32.mrf.mxu0
  %1054 = vmatprep.mubr.f32.mxu0 0.0
  %1055 = vmatmul.mubr.f32.gmra.mxu0 %v857
  %v1056 = vpop.f32.mrf.mxu0
  %v1057 = vadd.f32 %v797, %v1056
  %v1058 = vpop.f32.mrf.mxu0
  %1059 = vmatprep.mubr.f32.mxu0 0.0
  %1060 = vmatmul.mubr.f32.gmra.mxu0 %v860
  %v1061 = vpop.f32.mrf.mxu0
  %v1062 = vadd.f32 %v797, %v1061
  %v1063 = vpop.f32.mrf.mxu0
  %1064 = vmatprep.mubr.f32.mxu0 0.0
  %1065 = vmatmul.mubr.f32.gmra.mxu0 %v863
  %v1066 = vpop.f32.mrf.mxu0
  %v1067 = vadd.f32 %v797, %v1066
  %v1068 = vpop.f32.mrf.mxu0
  %1069 = vmatprep.mubr.f32.mxu0 0.0
  %1070 = vmatmul.mubr.f32.gmra.mxu0 %v866
  %v1071 = vpop.f32.mrf.mxu0
  %v1072 = vadd.f32 %v797, %v1071
  %v1073 = vpop.f32.mrf.mxu0
  %1074 = vmatprep.mubr.f32.mxu0 0.0
  %1075 = vmatmul.mubr.f32.gmra.mxu0 %v869
  %v1076 = vpop.f32.mrf.mxu0
  %v1077 = vadd.f32 %v797, %v1076
  %v1078 = vpop.f32.mrf.mxu0
  %1079 = vmatprep.mubr.f32.mxu0 0.0
  %1080 = vmatmul.mubr.f32.gmra.mxu0 %v872
  %v1081 = vpop.f32.mrf.mxu0
  %v1082 = vadd.f32 %v797, %v1081
  %v1083 = vpop.f32.mrf.mxu0
  %1084 = vmatprep.mubr.f32.mxu0 0.0
  %1085 = vmatmul.mubr.f32.gmra.mxu0 %v875
  %v1086 = vpop.f32.mrf.mxu0
  %v1087 = vadd.f32 %v797, %v1086
  %v1088 = vpop.f32.mrf.mxu0
  %1089 = vmatprep.mubr.f32.mxu0 0.0
  %1090 = vmatmul.mubr.f32.gmra.mxu0 %v878
  %v1091 = vpop.f32.mrf.mxu0
  %v1092 = vadd.f32 %v797, %v1091
  %v1093 = vpop.f32.mrf.mxu0
  %1094 = vmatprep.mubr.f32.mxu0 0.0
  %1095 = vmatmul.mubr.f32.gmra.mxu0 %v881
  %v1096 = vpop.f32.mrf.mxu0
  %v1097 = vadd.f32 %v797, %v1096
  %v1098 = vpop.f32.mrf.mxu0
  %1099 = vmatprep.mubr.f32.mxu0 0.0
  %1100 = vmatmul.mubr.f32.gmra.mxu0 %v884
  %v1101 = vpop.f32.mrf.mxu0
  %v1102 = vadd.f32 %v797, %v1101
  %v1103 = vpop.f32.mrf.mxu0
  %1104 = vmatprep.mubr.f32.mxu0 0.0
  %1105 = vmatmul.mubr.f32.gmra.mxu0 %v887
  %v1106 = vpop.f32.mrf.mxu0
  %v1107 = vadd.f32 %v797, %v1106
  %v1108 = vpop.f32.mrf.mxu0
  %1109 = vmatprep.mubr.f32.mxu0 0.0
  %1110 = vmatmul.mubr.f32.gmra.mxu0 %v890
  %v1111 = vpop.f32.mrf.mxu0
  %v1112 = vadd.f32 %v797, %v1111
  %v1113 = vpop.f32.mrf.mxu0
  %1114 = vmatprep.mubr.f32.mxu0 0.0
  %1115 = vmatmul.mubr.f32.gmra.mxu0 %v893
  %v1116 = vpop.f32.mrf.mxu0
  %v1117 = vadd.f32 %v797, %v1116
  %v1118 = vpop.f32.mrf.mxu0
  %1119 = vdwg.mxu0
  %1120 = vst.msk [vmem:[%s3] sm:$0xff] %vm75, %v962
  %1121 = vst.msk [vmem:[%s3 + $0x8] sm:$0xff] %vm75, %v967
  %1122 = vst.msk [vmem:[%s3 + $0x10] sm:$0xff] %vm75, %v972
  %1123 = vst.msk [vmem:[%s3 + $0x18] sm:$0xff] %vm75, %v977
  %1124 = vst.msk [vmem:[%s3 + $0x20] sm:$0xff] %vm75, %v982
  %1125 = vst.msk [vmem:[%s3 + $0x28] sm:$0xff] %vm75, %v987
  %1126 = vst.msk [vmem:[%s3 + $0x30] sm:$0xff] %vm75, %v992
  %1127 = vst.msk [vmem:[%s3 + $0x38] sm:$0xff] %vm75, %v997
  %1128 = vst.msk [vmem:[%s3 + $0x40] sm:$0xff] %vm75, %v1002
  %1129 = vst.msk [vmem:[%s3 + $0x48] sm:$0xff] %vm75, %v1007
  %1130 = vst.msk [vmem:[%s3 + $0x50] sm:$0xff] %vm75, %v1012
  %1131 = vst.msk [vmem:[%s3 + $0x58] sm:$0xff] %vm75, %v1017
  %1132 = vst.msk [vmem:[%s3 + $0x60] sm:$0xff] %vm75, %v1022
  %1133 = vst.msk [vmem:[%s3 + $0x68] sm:$0xff] %vm75, %v1027
  %1134 = vst.msk [vmem:[%s3 + $0x70] sm:$0xff] %vm75, %v1032
  %1135 = vst.msk [vmem:[%s3 + $0x78] sm:$0xff] %vm75, %v1037
  %1136 = vst.msk [vmem:[%s3 + $0x80] sm:$0xff] %vm75, %v1042
  %1137 = vst.msk [vmem:[%s3 + $0x88] sm:$0xff] %vm75, %v1047
  %1138 = vst.msk [vmem:[%s3 + $0x90] sm:$0xff] %vm75, %v1052
  %1139 = vst.msk [vmem:[%s3 + $0x98] sm:$0xff] %vm75, %v1057
  %1140 = vst.msk [vmem:[%s3 + $0xa0] sm:$0xff] %vm75, %v1062
  %1141 = vst.msk [vmem:[%s3 + $0xa8] sm:$0xff] %vm75, %v1067
  %1142 = vst.msk [vmem:[%s3 + $0xb0] sm:$0xff] %vm75, %v1072
  %1143 = vst.msk [vmem:[%s3 + $0xb8] sm:$0xff] %vm75, %v1077
  %1144 = vst.msk [vmem:[%s3 + $0xc0] sm:$0xff] %vm75, %v1082
  %1145 = vst.msk [vmem:[%s3 + $0xc8] sm:$0xff] %vm75, %v1087
  %1146 = vst.msk [vmem:[%s3 + $0xd0] sm:$0xff] %vm75, %v1092
  %1147 = vst.msk [vmem:[%s3 + $0xd8] sm:$0xff] %vm75, %v1097
  %1148 = vst.msk [vmem:[%s3 + $0xe0] sm:$0xff] %vm75, %v1102
  %1149 = vst.msk [vmem:[%s3 + $0xe8] sm:$0xff] %vm75, %v1107
  %1150 = vst.msk [vmem:[%s3 + $0xf0] sm:$0xff] %vm75, %v1112
  %1151 = vst.msk [vmem:[%s3 + $0xf8] sm:$0xff] %vm75, %v1117
  // Predicated region
  $region14: #{tpu_custom_call.1} parent=0 // pred_check
    _
  $region15: #{tpu_custom_call.1} parent=0 // pred_check_branch
    %1153 = sbr.rel (0) target = $region17
  $region16: #{tpu_custom_call.1} parent=0 // pred_region
    _
  $region17: #{tpu_custom_call.1} parent=0 // pred_fallthru
    _
  // Predicated region
  $region18: #{tpu_custom_call.1} parent=0 // pred_check
    _
  $region19: #{tpu_custom_call.1} parent=0 // pred_check_branch
    %1155 = sbr.rel (0) target = $region21
  $region20: #{tpu_custom_call.1} parent=0 // pred_region
    _
  $region21: #{tpu_custom_call.1} parent=0 // pred_fallthru
    _

</llo_original>
